<compile_context>
chip_gen: v7x
topology: tpu7x:2x2x1
jax: 0.10.0
libtpu: 0.0.40
codegen_flags: <defaults>
</compile_context>

<pallas_src>
import functools

import jax
import jax.numpy as jnp
from jax.experimental import pallas as pl
from jax.experimental.pallas import tpu as pltpu


def mlp_kernel(x_ref, w1_ref, b1_ref, w2_ref, b2_ref, w3_ref, b3_ref, o_ref):
    # x arrives as f32; cast to bf16 at the dot input (in-kernel, on the VPU).
    x = x_ref[...].astype(jnp.bfloat16)

    h1 = jnp.dot(x, w1_ref[...], preferred_element_type=jnp.float32)
    h1 = jnp.maximum(h1 + b1_ref[...], 0.0)                 # f32 bias + ReLU

    h2 = jnp.dot(h1.astype(jnp.bfloat16), w2_ref[...],
                 preferred_element_type=jnp.float32)
    h2 = jnp.maximum(h2 + b2_ref[...], 0.0)                 # f32 bias + ReLU

    h3 = jnp.dot(h2.astype(jnp.bfloat16), w3_ref[...],
                 preferred_element_type=jnp.float32)
    o_ref[...] = (h3 + b3_ref[...]).astype(o_ref.dtype)


def _lane_pack_factor(d_out, max_pack=8):
    """How many batch rows to pack per kernel row so the OUTPUT is lane-dense
    (>=128 lanes => unmasked full-width stores)."""
    pack = 1
    while pack < max_pack and d_out * pack < 128:
        pack *= 2
    return pack


def _pick_block_rows(packed_batch, p_in, p_h1, p_h2, p_out,
                     target_x_tile_bytes=2 << 20,
                     vmem_budget_bytes=14 << 20):
    """Pick the packed-batch tile (rows of the packed layout) by VMEM bytes."""
    x_row = p_in * 4                       # f32 x row
    out_row = p_out * 4                    # f32 out row
    inter_row = (p_h1 + p_h2) * 4          # f32 h1/h2 intermediates
    per_row = 2 * x_row + 2 * out_row + inter_row   # 2x = double buffering
    resident = (2 * (p_in * p_h1 + p_h1 * p_h2 + p_h2 * p_out)   # bf16 weights
                + 4 * (p_h1 + p_h2 + p_out))                     # f32 biases

    # Whole batch as one block when it fits comfortably: no per-step overhead.
    if packed_batch * per_row + resident <= vmem_budget_bytes // 2:
        return packed_batch

    bb = max(16, target_x_tile_bytes // x_row)       # MiB-scale x tiles
    bb = min(bb, max(16, packed_batch // 4))         # >=4 steps (2 per TC on v7x)
    bb = max(16, (bb // 16) * 16)                    # bf16 sublane multiple
    while bb > 16 and bb * per_row + resident > vmem_budget_bytes:
        bb = max(16, ((bb // 2) // 16) * 16)
    return min(bb, packed_batch)


@jax.jit
def mlp_forward(x, params):
    """x: [..., input_size] float32. params: dict of w1,b1,w2,b2,w3,b3."""
    lead = x.shape[:-1]
    d_in = x.shape[-1]
    w1, b1 = params["w1"], params["b1"]
    w2, b2 = params["w2"], params["b2"]
    w3, b3 = params["w3"], params["b3"]
    d_h1, d_h2, d_out = w1.shape[1], w2.shape[1], w3.shape[1]

    x2 = x.reshape(-1, d_in).astype(jnp.float32)
    batch = x2.shape[0]

    # Lane-pack `pack` batch rows per kernel row using block-diagonal weights
    # (mathematically exact: blockdiag matmul == per-block matmul).
    pack = _lane_pack_factor(d_out)
    pad = (-batch) % pack
    if pad:
        x2 = jnp.pad(x2, ((0, pad), (0, 0)))
    batch_p = batch + pad
    pb = batch_p // pack

    p_in, p_h1, p_h2, p_out = pack * d_in, pack * d_h1, pack * d_h2, pack * d_out
    xp = x2.reshape(pb, p_in)                       # row-major: free repack

    eye = jnp.eye(pack, dtype=jnp.float32)
    w1p = jnp.kron(eye, w1.astype(jnp.float32)).astype(jnp.bfloat16)
    w2p = jnp.kron(eye, w2.astype(jnp.float32)).astype(jnp.bfloat16)
    w3p = jnp.kron(eye, w3.astype(jnp.float32)).astype(jnp.bfloat16)
    b1p = jnp.tile(b1.reshape(1, d_h1).astype(jnp.float32), (1, pack))
    b2p = jnp.tile(b2.reshape(1, d_h2).astype(jnp.float32), (1, pack))
    b3p = jnp.tile(b3.reshape(1, d_out).astype(jnp.float32), (1, pack))

    bb = _pick_block_rows(pb, p_in, p_h1, p_h2, p_out)
    grid = (pl.cdiv(pb, bb),)

    out_p = pl.pallas_call(
        mlp_kernel,
        out_shape=jax.ShapeDtypeStruct((pb, p_out), jnp.float32),
        grid_spec=pltpu.PrefetchScalarGridSpec(
            num_scalar_prefetch=0,
            grid=grid,
            in_specs=[
                # batch-tiled activations (f32 in, cast to bf16 in-kernel)
                pl.BlockSpec((bb, p_in), lambda i: (i, 0)),
                # grid-invariant weights / biases (full-array blocks)
                pl.BlockSpec((p_in, p_h1), lambda i: (0, 0)),
                pl.BlockSpec((1, p_h1), lambda i: (0, 0)),
                pl.BlockSpec((p_h1, p_h2), lambda i: (0, 0)),
                pl.BlockSpec((1, p_h2), lambda i: (0, 0)),
                pl.BlockSpec((p_h2, p_out), lambda i: (0, 0)),
                pl.BlockSpec((1, p_out), lambda i: (0, 0)),
            ],
            # p_out >= 128 lanes after packing => unmasked, lane-dense stores.
            out_specs=pl.BlockSpec((bb, p_out), lambda i: (i, 0)),
        ),
        compiler_params=pltpu.CompilerParams(
            dimension_semantics=("parallel",),
        ),
    )(xp, w1p, b1p, w2p, b2p, w3p, b3p)

    out = out_p.reshape(batch_p, d_out)[:batch]
    return out.reshape(lead + (d_out,))


def init_mlp_params(key, input_size, hidden_din, dtype=jnp.float32):
    """Mimics PyTorch nn.Linear default init: U(-1/sqrt(fan_in), +1/sqrt(fan_in)).
    Weights stored [in, out] (transpose of PyTorch) so the kernel does x @ W."""
    dims = [
        (input_size, input_size // 2),
        (input_size // 2, input_size // 4),
        (input_size // 4, hidden_din),
    ]
    params = {}
    keys = jax.random.split(key, 2 * len(dims))
    for idx, (fan_in, fan_out) in enumerate(dims):
        bound = 1.0 / (fan_in ** 0.5)
        params[f"w{idx + 1}"] = jax.random.uniform(
            keys[2 * idx], (fan_in, fan_out), dtype, minval=-bound, maxval=bound)
        params[f"b{idx + 1}"] = jax.random.uniform(
            keys[2 * idx + 1], (1, fan_out), dtype, minval=-bound, maxval=bound)
    return params


def mlp_reference(x, params):
    """Pure-f32 reference (semantics of the original PyTorch module)."""
    h = jnp.maximum(x @ params["w1"] + params["b1"], 0.0)
    h = jnp.maximum(h @ params["w2"] + params["b2"], 0.0)
    return h @ params["w3"] + params["b3"]


def mlp_reference_bf16(x, params):
    """Reference mimicking the kernel's bf16 MXU inputs / f32 accumulation."""
    def dense(h, w, b):
        return jnp.dot(h.astype(jnp.bfloat16), w.astype(jnp.bfloat16),
                       preferred_element_type=jnp.float32) + b.astype(jnp.float32)
    h = jnp.maximum(dense(x, params["w1"], params["b1"]), 0.0)
    h = jnp.maximum(dense(h, params["w2"], params["b2"]), 0.0)
    return dense(h, params["w3"], params["b3"])


if __name__ == "__main__":
    key = jax.random.PRNGKey(0)
    k_x, k_p = jax.random.split(key)

    # Small demo consistent with the module: features 32 -> 16 -> 8 -> 16.
    batch = 1024
    input_size = 32
    hidden_din = 16

    x = jax.random.normal(k_x, (batch, input_size), dtype=jnp.float32)
    params = init_mlp_params(k_p, input_size, hidden_din)

    out = jax.block_until_ready(mlp_forward(x, params))
    assert out.shape == (batch, hidden_din), out.shape

    # Check against a reference with the same bf16-input / f32-accum recipe.
    ref_bf16 = mlp_reference_bf16(x, params)
    err_bf16 = float(jnp.max(jnp.abs(out - ref_bf16)))
    assert err_bf16 < 2e-2, f"bf16-recipe reference mismatch: {err_bf16}"

    # Sanity check against the pure-f32 module semantics (loose tolerance
    # covers bf16 rounding of x / weights / intermediates).
    ref_f32 = mlp_reference(x, params)
    err_f32 = float(jnp.max(jnp.abs(out - ref_f32)))
    assert err_f32 < 6e-2, f"f32 reference mismatch: {err_f32}"

    print("KERNEL_OK")
</pallas_src>

<mosaic_0001>
module attributes {stable_mosaic.version = 11 : i64} {
  func.func @mlp_kernel(%arg0: i32, %arg1: memref<128x256xf32, #tpu.memory_space<vmem>>, %arg2: memref<256x128xbf16, #tpu.memory_space<vmem>>, %arg3: memref<1x128xf32, #tpu.memory_space<vmem>>, %arg4: memref<128x64xbf16, #tpu.memory_space<vmem>>, %arg5: memref<1x64xf32, #tpu.memory_space<vmem>>, %arg6: memref<64x128xbf16, #tpu.memory_space<vmem>>, %arg7: memref<1x128xf32, #tpu.memory_space<vmem>>, %arg8: memref<128x128xf32, #tpu.memory_space<vmem>>) attributes {dimension_semantics = [#tpu.dimension_semantics<parallel>], iteration_bounds = array<i64: 1>, scalar_prefetch = 0 : i64, scratch_operands = 0 : i64, tpu.core_type = #tpu.core_type<tc>, window_params = [{transform_indices = @transform_0, window_bounds = array<i64: 128, 256>}, {pipeline_mode = #tpu.pipeline_mode<synchronous>, transform_indices = @transform_1, window_bounds = array<i64: 256, 128>}, {pipeline_mode = #tpu.pipeline_mode<synchronous>, transform_indices = @transform_2, window_bounds = array<i64: 1, 128>}, {pipeline_mode = #tpu.pipeline_mode<synchronous>, transform_indices = @transform_3, window_bounds = array<i64: 128, 64>}, {pipeline_mode = #tpu.pipeline_mode<synchronous>, transform_indices = @transform_4, window_bounds = array<i64: 1, 64>}, {pipeline_mode = #tpu.pipeline_mode<synchronous>, transform_indices = @transform_5, window_bounds = array<i64: 64, 128>}, {pipeline_mode = #tpu.pipeline_mode<synchronous>, transform_indices = @transform_6, window_bounds = array<i64: 1, 128>}, {transform_indices = @transform_7, window_bounds = array<i64: 128, 128>}]} {
    %c0 = arith.constant 0 : index
    %c0_0 = arith.constant 0 : index
    %0 = vector.load %arg1[%c0, %c0_0] : memref<128x256xf32, #tpu.memory_space<vmem>>, vector<128x256xf32>
    %1 = arith.truncf %0 : vector<128x256xf32> to vector<128x256xbf16>
    %c0_1 = arith.constant 0 : index
    %c0_2 = arith.constant 0 : index
    %2 = vector.load %arg2[%c0_1, %c0_2] : memref<256x128xbf16, #tpu.memory_space<vmem>>, vector<256x128xbf16>
    %cst = arith.constant dense<0.000000e+00> : vector<128x128xf32>
    %3 = tpu.matmul %1, %2, %cst {dimension_numbers = #tpu.dot_dimension_numbers<[1], [0], [0], [1], [0, 0, 1, 1], [], []>} : vector<128x256xbf16>, vector<256x128xbf16>, vector<128x128xf32> -> vector<128x128xf32>
    %c0_3 = arith.constant 0 : index
    %c0_4 = arith.constant 0 : index
    %4 = vector.load %arg3[%c0_3, %c0_4] : memref<1x128xf32, #tpu.memory_space<vmem>>, vector<1x128xf32>
    %5 = vector.broadcast %4 : vector<1x128xf32> to vector<128x128xf32>
    %6 = arith.addf %3, %5 : vector<128x128xf32>
    %cst_5 = arith.constant 0.000000e+00 : f32
    %7 = vector.broadcast %cst_5 : f32 to vector<128x128xf32>
    %8 = arith.maximumf %6, %7 : vector<128x128xf32>
    %9 = arith.truncf %8 : vector<128x128xf32> to vector<128x128xbf16>
    %c0_6 = arith.constant 0 : index
    %c0_7 = arith.constant 0 : index
    %10 = vector.load %arg4[%c0_6, %c0_7] : memref<128x64xbf16, #tpu.memory_space<vmem>>, vector<128x64xbf16>
    %cst_8 = arith.constant dense<0.000000e+00> : vector<128x64xf32>
    %11 = tpu.matmul %9, %10, %cst_8 {dimension_numbers = #tpu.dot_dimension_numbers<[1], [0], [0], [1], [0, 0, 1, 1], [], []>} : vector<128x128xbf16>, vector<128x64xbf16>, vector<128x64xf32> -> vector<128x64xf32>
    %c0_9 = arith.constant 0 : index
    %c0_10 = arith.constant 0 : index
    %12 = vector.load %arg5[%c0_9, %c0_10] : memref<1x64xf32, #tpu.memory_space<vmem>>, vector<1x64xf32>
    %13 = vector.broadcast %12 : vector<1x64xf32> to vector<128x64xf32>
    %14 = arith.addf %11, %13 : vector<128x64xf32>
    %cst_11 = arith.constant 0.000000e+00 : f32
    %15 = vector.broadcast %cst_11 : f32 to vector<128x64xf32>
    %16 = arith.maximumf %14, %15 : vector<128x64xf32>
    %17 = arith.truncf %16 : vector<128x64xf32> to vector<128x64xbf16>
    %c0_12 = arith.constant 0 : index
    %c0_13 = arith.constant 0 : index
    %18 = vector.load %arg6[%c0_12, %c0_13] : memref<64x128xbf16, #tpu.memory_space<vmem>>, vector<64x128xbf16>
    %cst_14 = arith.constant dense<0.000000e+00> : vector<128x128xf32>
    %19 = tpu.matmul %17, %18, %cst_14 {dimension_numbers = #tpu.dot_dimension_numbers<[1], [0], [0], [1], [0, 0, 1, 1], [], []>} : vector<128x64xbf16>, vector<64x128xbf16>, vector<128x128xf32> -> vector<128x128xf32>
    %c0_15 = arith.constant 0 : index
    %c0_16 = arith.constant 0 : index
    %20 = vector.load %arg7[%c0_15, %c0_16] : memref<1x128xf32, #tpu.memory_space<vmem>>, vector<1x128xf32>
    %21 = vector.broadcast %20 : vector<1x128xf32> to vector<128x128xf32>
    %22 = arith.addf %19, %21 : vector<128x128xf32>
    %c0_17 = arith.constant 0 : index
    %c0_18 = arith.constant 0 : index
    %23 = vector.load %arg8[%c0_17, %c0_18] : memref<128x128xf32, #tpu.memory_space<vmem>>, vector<128x128xf32>
    tpu.vector_store %arg8[%c0_17, %c0_18], %22 {strides = array<i32>} : memref<128x128xf32, #tpu.memory_space<vmem>>, vector<128x128xf32>,
    return
  }
  func.func @transform_0(%arg0: i32) -> (i32, i32) {
    %c0_i32 = arith.constant 0 : i32
    %c0_i32_0 = arith.constant 0 : i32
    return %arg0, %c0_i32 : i32, i32
  }
  func.func @transform_1(%arg0: i32) -> (i32, i32) {
    %c0_i32 = arith.constant 0 : i32
    %c0_i32_0 = arith.constant 0 : i32
    %c0_i32_1 = arith.constant 0 : i32
    return %c0_i32, %c0_i32_0 : i32, i32
  }
  func.func @transform_2(%arg0: i32) -> (i32, i32) {
    %c0_i32 = arith.constant 0 : i32
    %c0_i32_0 = arith.constant 0 : i32
    %c0_i32_1 = arith.constant 0 : i32
    return %c0_i32, %c0_i32_0 : i32, i32
  }
  func.func @transform_3(%arg0: i32) -> (i32, i32) {
    %c0_i32 = arith.constant 0 : i32
    %c0_i32_0 = arith.constant 0 : i32
    %c0_i32_1 = arith.constant 0 : i32
    return %c0_i32, %c0_i32_0 : i32, i32
  }
  func.func @transform_4(%arg0: i32) -> (i32, i32) {
    %c0_i32 = arith.constant 0 : i32
    %c0_i32_0 = arith.constant 0 : i32
    %c0_i32_1 = arith.constant 0 : i32
    return %c0_i32, %c0_i32_0 : i32, i32
  }
  func.func @transform_5(%arg0: i32) -> (i32, i32) {
    %c0_i32 = arith.constant 0 : i32
    %c0_i32_0 = arith.constant 0 : i32
    %c0_i32_1 = arith.constant 0 : i32
    return %c0_i32, %c0_i32_0 : i32, i32
  }
  func.func @transform_6(%arg0: i32) -> (i32, i32) {
    %c0_i32 = arith.constant 0 : i32
    %c0_i32_0 = arith.constant 0 : i32
    %c0_i32_1 = arith.constant 0 : i32
    return %c0_i32, %c0_i32_0 : i32, i32
  }
  func.func @transform_7(%arg0: i32) -> (i32, i32) {
    %c0_i32 = arith.constant 0 : i32
    %c0_i32_0 = arith.constant 0 : i32
    return %arg0, %c0_i32 : i32, i32
  }
}

</mosaic_0001>

<llo_original>
// kernel: mlp_forward.1
$region0: #{mlp_forward.1}
  #allocation0 [shape = 'u32[]', space=smem, size = 0x4, offset = 0x4, fixed_abs, tag = 'smem constant byte address 0x4 - core index']
  #allocation1 [shape = 'u32[144,128]{1,0:T(1,128)}', space=vmem, size = 0x12000, scoped, tag = 'internal scratch']
  %s0 = inlined_call_operand.vmem [shape: f32[128,256], index: 0, kind: input, shape index: {}]
  %s1 = inlined_call_operand.vmem [shape: bf16[256,128], index: 1, kind: input, shape index: {}]
  %s2 = inlined_call_operand.vmem [shape: f32[1,128], index: 2, kind: input, shape index: {}]
  %s3 = inlined_call_operand.vmem [shape: bf16[128,64], index: 3, kind: input, shape index: {}]
  %s4 = inlined_call_operand.vmem [shape: f32[1,64], index: 4, kind: input, shape index: {}]
  %s5 = inlined_call_operand.vmem [shape: bf16[64,128], index: 5, kind: input, shape index: {}]
  %s6 = inlined_call_operand.vmem [shape: f32[1,128], index: 6, kind: input, shape index: {}]
  %s7 = inlined_call_operand.vmem [shape: f32[128,128], index: 7, kind: output, shape index: {}]
  %s8 = sld [smem:[#allocation0]]
  $region38: #{mlp_forward.1} parent=0
    _
  %s10 = ssub.s32 1, %s8
  %s11 = scalar_select 0, %s10, %s8
  // Predicated region
  $region2: #{mlp_forward.1} parent=0 // pred_check
    _
  $region3: #{mlp_forward.1} parent=0 // pred_check_branch
    %13 = sbr.rel (0) target = $region5
  $region4: #{mlp_forward.1} parent=0 // pred_region
    _
  $region5: #{mlp_forward.1} parent=0 // pred_fallthru
    _
  // Predicated region
  $region6: #{mlp_forward.1} parent=0 // pred_check
    _
  $region7: #{mlp_forward.1} parent=0 // pred_check_branch
    %15 = sbr.rel (0) target = $region9
  $region8: #{mlp_forward.1} parent=0 // pred_region
    _
  $region9: #{mlp_forward.1} parent=0 // pred_fallthru
    _
  // Predicated region
  $region10: #{mlp_forward.1} parent=0 // pred_check
    _
  $region11: #{mlp_forward.1} parent=0 // pred_check_branch
    %17 = sbr.rel (0) target = $region13
  $region12: #{mlp_forward.1} parent=0 // pred_region
    _
  $region13: #{mlp_forward.1} parent=0 // pred_fallthru
    _
  // Predicated region
  $region14: #{mlp_forward.1} parent=0 // pred_check
    _
  $region15: #{mlp_forward.1} parent=0 // pred_check_branch
    %19 = sbr.rel (0) target = $region17
  $region16: #{mlp_forward.1} parent=0 // pred_region
    _
  $region17: #{mlp_forward.1} parent=0 // pred_fallthru
    _
  // Predicated region
  $region18: #{mlp_forward.1} parent=0 // pred_check
    _
  $region19: #{mlp_forward.1} parent=0 // pred_check_branch
    %21 = sbr.rel (0) target = $region21
  $region20: #{mlp_forward.1} parent=0 // pred_region
    _
  $region21: #{mlp_forward.1} parent=0 // pred_fallthru
    _
  // Predicated region
  $region22: #{mlp_forward.1} parent=0 // pred_check
    _
  $region23: #{mlp_forward.1} parent=0 // pred_check_branch
    %23 = sbr.rel (0) target = $region25
  $region24: #{mlp_forward.1} parent=0 // pred_region
    _
  $region25: #{mlp_forward.1} parent=0 // pred_fallthru
    _
  // Predicated region
  $region26: #{mlp_forward.1} parent=0 // pred_check
    _
  $region27: #{mlp_forward.1} parent=0 // pred_check_branch
    %25 = sbr.rel (0) target = $region29
  $region28: #{mlp_forward.1} parent=0 // pred_region
    _
  $region29: #{mlp_forward.1} parent=0 // pred_fallthru
    _
  %v27 = vld [vmem:[%s0] sm:$0xff]
  %v28 = vld [vmem:[%s0 + $0x8] sm:$0xff]
  %v29 = vld [vmem:[%s0 + $0x10] sm:$0xff]
  %v30 = vld [vmem:[%s0 + $0x18] sm:$0xff]
  %v31 = vld [vmem:[%s0 + $0x20] sm:$0xff]
  %v32 = vld [vmem:[%s0 + $0x28] sm:$0xff]
  %v33 = vld [vmem:[%s0 + $0x30] sm:$0xff]
  %v34 = vld [vmem:[%s0 + $0x38] sm:$0xff]
  %v35 = vld [vmem:[%s0 + $0x40] sm:$0xff]
  %v36 = vld [vmem:[%s0 + $0x48] sm:$0xff]
  %v37 = vld [vmem:[%s0 + $0x50] sm:$0xff]
  %v38 = vld [vmem:[%s0 + $0x58] sm:$0xff]
  %v39 = vld [vmem:[%s0 + $0x60] sm:$0xff]
  %v40 = vld [vmem:[%s0 + $0x68] sm:$0xff]
  %v41 = vld [vmem:[%s0 + $0x70] sm:$0xff]
  %v42 = vld [vmem:[%s0 + $0x78] sm:$0xff]
  %v43 = vld [vmem:[%s0 + $0x80] sm:$0xff]
  %v44 = vld [vmem:[%s0 + $0x88] sm:$0xff]
  %v45 = vld [vmem:[%s0 + $0x90] sm:$0xff]
  %v46 = vld [vmem:[%s0 + $0x98] sm:$0xff]
  %v47 = vld [vmem:[%s0 + $0xa0] sm:$0xff]
  %v48 = vld [vmem:[%s0 + $0xa8] sm:$0xff]
  %v49 = vld [vmem:[%s0 + $0xb0] sm:$0xff]
  %v50 = vld [vmem:[%s0 + $0xb8] sm:$0xff]
  %v51 = vld [vmem:[%s0 + $0xc0] sm:$0xff]
  %v52 = vld [vmem:[%s0 + $0xc8] sm:$0xff]
  %v53 = vld [vmem:[%s0 + $0xd0] sm:$0xff]
  %v54 = vld [vmem:[%s0 + $0xd8] sm:$0xff]
  %v55 = vld [vmem:[%s0 + $0xe0] sm:$0xff]
  %v56 = vld [vmem:[%s0 + $0xe8] sm:$0xff]
  %v57 = vld [vmem:[%s0 + $0xf0] sm:$0xff]
  %v58 = vld [vmem:[%s0 + $0xf8] sm:$0xff]
  %v59 = vpack.c.bf16 %v29, %v27
  %v60 = vpack.c.bf16 %v30, %v28
  %v61 = vpack.c.bf16 %v33, %v31
  %v62 = vpack.c.bf16 %v34, %v32
  %v63 = vpack.c.bf16 %v37, %v35
  %v64 = vpack.c.bf16 %v38, %v36
  %v65 = vpack.c.bf16 %v41, %v39
  %v66 = vpack.c.bf16 %v42, %v40
  %v67 = vpack.c.bf16 %v45, %v43
  %v68 = vpack.c.bf16 %v46, %v44
  %v69 = vpack.c.bf16 %v49, %v47
  %v70 = vpack.c.bf16 %v50, %v48
  %v71 = vpack.c.bf16 %v53, %v51
  %v72 = vpack.c.bf16 %v54, %v52
  %v73 = vpack.c.bf16 %v57, %v55
  %v74 = vpack.c.bf16 %v58, %v56
  %v75 = vld [vmem:[%s1] sm:$0xf]
  %v76 = vld [vmem:[%s1 + $0x4] sm:$0xf]
  %v77 = vld [vmem:[%s1 + $0x8] sm:$0xf]
  %v78 = vld [vmem:[%s1 + $0xc] sm:$0xf]
  %v79 = vld [vmem:[%s1 + $0x10] sm:$0xf]
  %v80 = vld [vmem:[%s1 + $0x14] sm:$0xf]
  %v81 = vld [vmem:[%s1 + $0x18] sm:$0xf]
  %v82 = vld [vmem:[%s1 + $0x1c] sm:$0xf]
  %v83 = vld [vmem:[%s1 + $0x20] sm:$0xf]
  %v84 = vld [vmem:[%s1 + $0x24] sm:$0xf]
  %v85 = vld [vmem:[%s1 + $0x28] sm:$0xf]
  %v86 = vld [vmem:[%s1 + $0x2c] sm:$0xf]
  %v87 = vld [vmem:[%s1 + $0x30] sm:$0xf]
  %v88 = vld [vmem:[%s1 + $0x34] sm:$0xf]
  %v89 = vld [vmem:[%s1 + $0x38] sm:$0xf]
  %v90 = vld [vmem:[%s1 + $0x3c] sm:$0xf]
  %v91 = vld [vmem:[%s1 + $0x40] sm:$0xf]
  %v92 = vld [vmem:[%s1 + $0x44] sm:$0xf]
  %v93 = vld [vmem:[%s1 + $0x48] sm:$0xf]
  %v94 = vld [vmem:[%s1 + $0x4c] sm:$0xf]
  %v95 = vld [vmem:[%s1 + $0x50] sm:$0xf]
  %v96 = vld [vmem:[%s1 + $0x54] sm:$0xf]
  %v97 = vld [vmem:[%s1 + $0x58] sm:$0xf]
  %v98 = vld [vmem:[%s1 + $0x5c] sm:$0xf]
  %v99 = vld [vmem:[%s1 + $0x60] sm:$0xf]
  %v100 = vld [vmem:[%s1 + $0x64] sm:$0xf]
  %v101 = vld [vmem:[%s1 + $0x68] sm:$0xf]
  %v102 = vld [vmem:[%s1 + $0x6c] sm:$0xf]
  %v103 = vld [vmem:[%s1 + $0x70] sm:$0xf]
  %v104 = vld [vmem:[%s1 + $0x74] sm:$0xf]
  %v105 = vld [vmem:[%s1 + $0x78] sm:$0xf]
  %v106 = vld [vmem:[%s1 + $0x7c] sm:$0xf]
  %v107 = vld [vmem:[%s2] sm:$0x1]
  %v109 = vlaneseq
  %v110 = vshrl.u32 %v109, 7
  %v111 = vsub.s32 0, %v110
  %v112 = vrot.slane %v107, %v111
  %v146 = vunpack.c.l.b16 %v75
  %v147 = vunpack.c.l.b16 %v76
  %v148 = vunpack.c.l.b16 %v77
  %v149 = vunpack.c.l.b16 %v78
  %v150 = vunpack.c.l.b16 %v79
  %v151 = vunpack.c.l.b16 %v80
  %v152 = vunpack.c.l.b16 %v81
  %v153 = vunpack.c.l.b16 %v82
  %v154 = vunpack.c.l.b16 %v83
  %v155 = vunpack.c.l.b16 %v84
  %v156 = vunpack.c.l.b16 %v85
  %v157 = vunpack.c.l.b16 %v86
  %v158 = vunpack.c.l.b16 %v87
  %v159 = vunpack.c.l.b16 %v88
  %v160 = vunpack.c.l.b16 %v89
  %v161 = vunpack.c.l.b16 %v90
  %v162 = vunpack.c.l.b16 %v91
  %v163 = vunpack.c.l.b16 %v92
  %v164 = vunpack.c.l.b16 %v93
  %v165 = vunpack.c.l.b16 %v94
  %v166 = vunpack.c.l.b16 %v95
  %v167 = vunpack.c.l.b16 %v96
  %v168 = vunpack.c.l.b16 %v97
  %v169 = vunpack.c.l.b16 %v98
  %v170 = vunpack.c.l.b16 %v99
  %v171 = vunpack.c.l.b16 %v100
  %v172 = vunpack.c.l.b16 %v101
  %v173 = vunpack.c.l.b16 %v102
  %v174 = vunpack.c.l.b16 %v103
  %v175 = vunpack.c.l.b16 %v104
  %v176 = vunpack.c.l.b16 %v105
  %v177 = vunpack.c.l.b16 %v106
  %v178 = vpack.c.b16 %v147, %v146
  %v179 = vpack.c.b16 %v149, %v148
  %v180 = vpack.c.b16 %v151, %v150
  %v181 = vpack.c.b16 %v153, %v152
  %v182 = vpack.c.b16 %v155, %v154
  %v183 = vpack.c.b16 %v157, %v156
  %v184 = vpack.c.b16 %v159, %v158
  %v185 = vpack.c.b16 %v161, %v160
  %v186 = vpack.c.b16 %v163, %v162
  %v187 = vpack.c.b16 %v165, %v164
  %v188 = vpack.c.b16 %v167, %v166
  %v189 = vpack.c.b16 %v169, %v168
  %v190 = vpack.c.b16 %v171, %v170
  %v191 = vpack.c.b16 %v173, %v172
  %v192 = vpack.c.b16 %v175, %v174
  %v193 = vpack.c.b16 %v177, %v176
  %210 = vmatprep.subr.bf16.mxu0 0
  %211 = vmatpush1.bf16.msra.mxu0 %v178
  %212 = vmatprep.subr.bf16.mxu0 0
  %213 = vmatpush1.bf16.msra.mxu0 %v179
  %214 = vmatprep.subr.bf16.mxu0 0
  %215 = vmatpush1.bf16.msra.mxu0 %v180
  %216 = vmatprep.subr.bf16.mxu0 0
  %217 = vmatpush1.bf16.msra.mxu0 %v181
  %218 = vmatprep.subr.bf16.mxu0 0
  %219 = vmatpush1.bf16.msra.mxu0 %v182
  %220 = vmatprep.subr.bf16.mxu0 0
  %221 = vmatpush1.bf16.msra.mxu0 %v183
  %222 = vmatprep.subr.bf16.mxu0 0
  %223 = vmatpush1.bf16.msra.mxu0 %v184
  %224 = vmatprep.subr.bf16.mxu0 0
  %225 = vmatpush1.bf16.msra.mxu0 %v185
  %226 = vmatprep.subr.bf16.mxu0 0
  %227 = vmatpush1.bf16.msra.mxu0 %v186
  %228 = vmatprep.subr.bf16.mxu0 0
  %229 = vmatpush1.bf16.msra.mxu0 %v187
  %230 = vmatprep.subr.bf16.mxu0 0
  %231 = vmatpush1.bf16.msra.mxu0 %v188
  %232 = vmatprep.subr.bf16.mxu0 0
  %233 = vmatpush1.bf16.msra.mxu0 %v189
  %234 = vmatprep.subr.bf16.mxu0 0
  %235 = vmatpush1.bf16.msra.mxu0 %v190
  %236 = vmatprep.subr.bf16.mxu0 0
  %237 = vmatpush1.bf16.msra.mxu0 %v191
  %238 = vmatprep.subr.bf16.mxu0 0
  %239 = vmatpush1.bf16.msra.mxu0 %v192
  %240 = vmatprep.subr.bf16.mxu0 0
  %241 = vmatpush1.bf16.msra.mxu0 %v193
  %242 = vmatprep.mubr.bf16.mxu0 %v60
  %243 = vmatmul.mubr.bf16.gmra.mrb[0].mxu0 %v59
  %v244 = vpop.f32.mrb[0].mxu0
  %v245 = vadd.f32 %v112, %v244
  %v246 = vpop.f32.mrb[0].mxu0
  %v247 = vpop.f32.mrb[0].mxu0
  %v248 = vadd.f32 %v112, %v247
  %v249 = vpop.f32.mrb[0].mxu0
  %250 = vmatprep.mubr.bf16.mxu0 %v62
  %251 = vmatmul.mubr.bf16.gmra.mrb[0].mxu0 %v61
  %v252 = vpop.f32.mrb[0].mxu0
  %v253 = vadd.f32 %v112, %v252
  %v254 = vpop.f32.mrb[0].mxu0
  %v255 = vpop.f32.mrb[0].mxu0
  %v256 = vadd.f32 %v112, %v255
  %v257 = vpop.f32.mrb[0].mxu0
  %258 = vmatprep.mubr.bf16.mxu0 %v64
  %259 = vmatmul.mubr.bf16.gmra.mrb[0].mxu0 %v63
  %v260 = vpop.f32.mrb[0].mxu0
  %v261 = vadd.f32 %v112, %v260
  %v262 = vpop.f32.mrb[0].mxu0
  %v263 = vpop.f32.mrb[0].mxu0
  %v264 = vadd.f32 %v112, %v263
  %v265 = vpop.f32.mrb[0].mxu0
  %266 = vmatprep.mubr.bf16.mxu0 %v66
  %267 = vmatmul.mubr.bf16.gmra.mrb[0].mxu0 %v65
  %v268 = vpop.f32.mrb[0].mxu0
  %v269 = vadd.f32 %v112, %v268
  %v270 = vpop.f32.mrb[0].mxu0
  %v271 = vpop.f32.mrb[0].mxu0
  %v272 = vadd.f32 %v112, %v271
  %v273 = vpop.f32.mrb[0].mxu0
  %274 = vmatprep.mubr.bf16.mxu0 %v68
  %275 = vmatmul.mubr.bf16.gmra.mrb[0].mxu0 %v67
  %v276 = vpop.f32.mrb[0].mxu0
  %v277 = vadd.f32 %v112, %v276
  %v278 = vpop.f32.mrb[0].mxu0
  %v279 = vpop.f32.mrb[0].mxu0
  %v280 = vadd.f32 %v112, %v279
  %v281 = vpop.f32.mrb[0].mxu0
  %282 = vmatprep.mubr.bf16.mxu0 %v70
  %283 = vmatmul.mubr.bf16.gmra.mrb[0].mxu0 %v69
  %v284 = vpop.f32.mrb[0].mxu0
  %v285 = vadd.f32 %v112, %v284
  %v286 = vpop.f32.mrb[0].mxu0
  %v287 = vpop.f32.mrb[0].mxu0
  %v288 = vadd.f32 %v112, %v287
  %v289 = vpop.f32.mrb[0].mxu0
  %290 = vmatprep.mubr.bf16.mxu0 %v72
  %291 = vmatmul.mubr.bf16.gmra.mrb[0].mxu0 %v71
  %v292 = vpop.f32.mrb[0].mxu0
  %v293 = vadd.f32 %v112, %v292
  %v294 = vpop.f32.mrb[0].mxu0
  %v295 = vpop.f32.mrb[0].mxu0
  %v296 = vadd.f32 %v112, %v295
  %v297 = vpop.f32.mrb[0].mxu0
  %298 = vmatprep.mubr.bf16.mxu0 %v74
  %299 = vmatmul.mubr.bf16.gmra.mrb[0].mxu0 %v73
  %v300 = vpop.f32.mrb[0].mxu0
  %v301 = vadd.f32 %v112, %v300
  %v302 = vpop.f32.mrb[0].mxu0
  %v303 = vpop.f32.mrb[0].mxu0
  %v304 = vadd.f32 %v112, %v303
  %v305 = vpop.f32.mrb[0].mxu0
  %306 = vdwg.mxu0
  %v307 = vmax.f32 %v245, 0.0
  %v308 = vmax.f32 %v248, 0.0
  %v309 = vmax.f32 %v253, 0.0
  %v310 = vmax.f32 %v256, 0.0
  %v311 = vmax.f32 %v261, 0.0
  %v312 = vmax.f32 %v264, 0.0
  %v313 = vmax.f32 %v269, 0.0
  %v314 = vmax.f32 %v272, 0.0
  %v315 = vmax.f32 %v277, 0.0
  %v316 = vmax.f32 %v280, 0.0
  %v317 = vmax.f32 %v285, 0.0
  %v318 = vmax.f32 %v288, 0.0
  %v319 = vmax.f32 %v293, 0.0
  %v320 = vmax.f32 %v296, 0.0
  %v321 = vmax.f32 %v301, 0.0
  %v322 = vmax.f32 %v304, 0.0
  %v323 = vpack.c.bf16 %v308, %v307
  %v324 = vpack.c.bf16 %v310, %v309
  %v325 = vpack.c.bf16 %v312, %v311
  %v326 = vpack.c.bf16 %v314, %v313
  %v327 = vpack.c.bf16 %v316, %v315
  %v328 = vpack.c.bf16 %v318, %v317
  %v329 = vpack.c.bf16 %v320, %v319
  %v330 = vpack.c.bf16 %v322, %v321
  %v331 = vld [vmem:[%s3] sm:$0xf]
  %v332 = vld [vmem:[%s3 + $0x4] sm:$0xf]
  %v333 = vld [vmem:[%s3 + $0x8] sm:$0xf]
  %v334 = vld [vmem:[%s3 + $0xc] sm:$0xf]
  %v335 = vld [vmem:[%s3 + $0x10] sm:$0xf]
  %v336 = vld [vmem:[%s3 + $0x14] sm:$0xf]
  %v337 = vld [vmem:[%s3 + $0x18] sm:$0xf]
  %v338 = vld [vmem:[%s3 + $0x1c] sm:$0xf]
  %v339 = vld [vmem:[%s3 + $0x20] sm:$0xf]
  %v340 = vld [vmem:[%s3 + $0x24] sm:$0xf]
  %v341 = vld [vmem:[%s3 + $0x28] sm:$0xf]
  %v342 = vld [vmem:[%s3 + $0x2c] sm:$0xf]
  %v343 = vld [vmem:[%s3 + $0x30] sm:$0xf]
  %v344 = vld [vmem:[%s3 + $0x34] sm:$0xf]
  %v345 = vld [vmem:[%s3 + $0x38] sm:$0xf]
  %v346 = vld [vmem:[%s3 + $0x3c] sm:$0xf]
  %v347 = vld [vmem:[%s4] sm:$0x1]
  %v349 = vlaneseq
  %v350 = vshrl.u32 %v349, 7
  %v351 = vsub.s32 0, %v350
  %v352 = vrot.slane %v347, %v351
  %v370 = vunpack.c.l.b16 %v331
  %v371 = vunpack.c.l.b16 %v332
  %v372 = vunpack.c.l.b16 %v333
  %v373 = vunpack.c.l.b16 %v334
  %v374 = vunpack.c.l.b16 %v335
  %v375 = vunpack.c.l.b16 %v336
  %v376 = vunpack.c.l.b16 %v337
  %v377 = vunpack.c.l.b16 %v338
  %v378 = vunpack.c.l.b16 %v339
  %v379 = vunpack.c.l.b16 %v340
  %v380 = vunpack.c.l.b16 %v341
  %v381 = vunpack.c.l.b16 %v342
  %v382 = vunpack.c.l.b16 %v343
  %v383 = vunpack.c.l.b16 %v344
  %v384 = vunpack.c.l.b16 %v345
  %v385 = vunpack.c.l.b16 %v346
  %v386 = vpack.c.b16 %v371, %v370
  %v387 = vpack.c.b16 %v373, %v372
  %v388 = vpack.c.b16 %v375, %v374
  %v389 = vpack.c.b16 %v377, %v376
  %v390 = vpack.c.b16 %v379, %v378
  %v391 = vpack.c.b16 %v381, %v380
  %v392 = vpack.c.b16 %v383, %v382
  %v393 = vpack.c.b16 %v385, %v384
  %402 = vmatprep.subr.bf16.mxu0 0
  %403 = vmatpush1.bf16.msra.mxu0 %v386
  %404 = vmatprep.subr.bf16.mxu0 0
  %405 = vmatpush1.bf16.msra.mxu0 %v387
  %406 = vmatprep.subr.bf16.mxu0 0
  %407 = vmatpush1.bf16.msra.mxu0 %v388
  %408 = vmatprep.subr.bf16.mxu0 0
  %409 = vmatpush1.bf16.msra.mxu0 %v389
  %410 = vmatprep.subr.bf16.mxu0 0
  %411 = vmatpush1.bf16.msra.mxu0 %v390
  %412 = vmatprep.subr.bf16.mxu0 0
  %413 = vmatpush1.bf16.msra.mxu0 %v391
  %414 = vmatprep.subr.bf16.mxu0 0
  %415 = vmatpush1.bf16.msra.mxu0 %v392
  %416 = vmatprep.subr.bf16.mxu0 0
  %417 = vmatpush1.bf16.msra.mxu0 %v393
  %418 = vmatprep.subr.bf16.mxu0 0
  %419 = vmatpush1.bf16.msra.mxu0 0
  %420 = vmatprep.subr.bf16.mxu0 0
  %421 = vmatpush1.bf16.msra.mxu0 0
  %422 = vmatprep.subr.bf16.mxu0 0
  %423 = vmatpush1.bf16.msra.mxu0 0
  %424 = vmatprep.subr.bf16.mxu0 0
  %425 = vmatpush1.bf16.msra.mxu0 0
  %426 = vmatprep.subr.bf16.mxu0 0
  %427 = vmatpush1.bf16.msra.mxu0 0
  %428 = vmatprep.subr.bf16.mxu0 0
  %429 = vmatpush1.bf16.msra.mxu0 0
  %430 = vmatprep.subr.bf16.mxu0 0
  %431 = vmatpush1.bf16.msra.mxu0 0
  %432 = vmatprep.subr.bf16.mxu0 0
  %433 = vmatpush1.bf16.msra.mxu0 0
  %434 = vmatprep.mubr.bf16.mxu0 0
  %435 = vmatmul.mubr.bf16.gmra.mrb[0].mxu0 %v323
  %v436 = vpop.f32.mrb[0].mxu0
  %v437 = vadd.f32 %v352, %v436
  %v438 = vpop.f32.mrb[0].mxu0
  %v439 = vpop.f32.mrb[0].mxu0
  %v440 = vadd.f32 %v352, %v439
  %v441 = vpop.f32.mrb[0].mxu0
  %442 = vmatprep.mubr.bf16.mxu0 0
  %443 = vmatmul.mubr.bf16.gmra.mrb[0].mxu0 %v324
  %v444 = vpop.f32.mrb[0].mxu0
  %v445 = vadd.f32 %v352, %v444
  %v446 = vpop.f32.mrb[0].mxu0
  %v447 = vpop.f32.mrb[0].mxu0
  %v448 = vadd.f32 %v352, %v447
  %v449 = vpop.f32.mrb[0].mxu0
  %450 = vmatprep.mubr.bf16.mxu0 0
  %451 = vmatmul.mubr.bf16.gmra.mrb[0].mxu0 %v325
  %v452 = vpop.f32.mrb[0].mxu0
  %v453 = vadd.f32 %v352, %v452
  %v454 = vpop.f32.mrb[0].mxu0
  %v455 = vpop.f32.mrb[0].mxu0
  %v456 = vadd.f32 %v352, %v455
  %v457 = vpop.f32.mrb[0].mxu0
  %458 = vmatprep.mubr.bf16.mxu0 0
  %459 = vmatmul.mubr.bf16.gmra.mrb[0].mxu0 %v326
  %v460 = vpop.f32.mrb[0].mxu0
  %v461 = vadd.f32 %v352, %v460
  %v462 = vpop.f32.mrb[0].mxu0
  %v463 = vpop.f32.mrb[0].mxu0
  %v464 = vadd.f32 %v352, %v463
  %v465 = vpop.f32.mrb[0].mxu0
  %466 = vmatprep.mubr.bf16.mxu0 0
  %467 = vmatmul.mubr.bf16.gmra.mrb[0].mxu0 %v327
  %v468 = vpop.f32.mrb[0].mxu0
  %v469 = vadd.f32 %v352, %v468
  %v470 = vpop.f32.mrb[0].mxu0
  %v471 = vpop.f32.mrb[0].mxu0
  %v472 = vadd.f32 %v352, %v471
  %v473 = vpop.f32.mrb[0].mxu0
  %474 = vmatprep.mubr.bf16.mxu0 0
  %475 = vmatmul.mubr.bf16.gmra.mrb[0].mxu0 %v328
  %v476 = vpop.f32.mrb[0].mxu0
  %v477 = vadd.f32 %v352, %v476
  %v478 = vpop.f32.mrb[0].mxu0
  %v479 = vpop.f32.mrb[0].mxu0
  %v480 = vadd.f32 %v352, %v479
  %v481 = vpop.f32.mrb[0].mxu0
  %482 = vmatprep.mubr.bf16.mxu0 0
  %483 = vmatmul.mubr.bf16.gmra.mrb[0].mxu0 %v329
  %v484 = vpop.f32.mrb[0].mxu0
  %v485 = vadd.f32 %v352, %v484
  %v486 = vpop.f32.mrb[0].mxu0
  %v487 = vpop.f32.mrb[0].mxu0
  %v488 = vadd.f32 %v352, %v487
  %v489 = vpop.f32.mrb[0].mxu0
  %490 = vmatprep.mubr.bf16.mxu0 0
  %491 = vmatmul.mubr.bf16.gmra.mrb[0].mxu0 %v330
  %v492 = vpop.f32.mrb[0].mxu0
  %v493 = vadd.f32 %v352, %v492
  %v494 = vpop.f32.mrb[0].mxu0
  %v495 = vpop.f32.mrb[0].mxu0
  %v496 = vadd.f32 %v352, %v495
  %v497 = vpop.f32.mrb[0].mxu0
  %498 = vdwg.mxu0
  %v499 = vmax.f32 %v437, 0.0
  %v500 = vmax.f32 %v440, 0.0
  %v501 = vmax.f32 %v445, 0.0
  %v502 = vmax.f32 %v448, 0.0
  %v503 = vmax.f32 %v453, 0.0
  %v504 = vmax.f32 %v456, 0.0
  %v505 = vmax.f32 %v461, 0.0
  %v506 = vmax.f32 %v464, 0.0
  %v507 = vmax.f32 %v469, 0.0
  %v508 = vmax.f32 %v472, 0.0
  %v509 = vmax.f32 %v477, 0.0
  %v510 = vmax.f32 %v480, 0.0
  %v511 = vmax.f32 %v485, 0.0
  %v512 = vmax.f32 %v488, 0.0
  %v513 = vmax.f32 %v493, 0.0
  %v514 = vmax.f32 %v496, 0.0
  %v515 = vpack.c.bf16 %v500, %v499
  %v516 = vpack.c.bf16 %v502, %v501
  %v517 = vpack.c.bf16 %v504, %v503
  %v518 = vpack.c.bf16 %v506, %v505
  %v519 = vpack.c.bf16 %v508, %v507
  %v520 = vpack.c.bf16 %v510, %v509
  %v521 = vpack.c.bf16 %v512, %v511
  %v522 = vpack.c.bf16 %v514, %v513
  %v523 = vld [vmem:[%s5] sm:$0xf]
  %v524 = vld [vmem:[%s5 + $0x4] sm:$0xf]
  %v525 = vld [vmem:[%s5 + $0x8] sm:$0xf]
  %v526 = vld [vmem:[%s5 + $0xc] sm:$0xf]
  %v527 = vld [vmem:[%s5 + $0x10] sm:$0xf]
  %v528 = vld [vmem:[%s5 + $0x14] sm:$0xf]
  %v529 = vld [vmem:[%s5 + $0x18] sm:$0xf]
  %v530 = vld [vmem:[%s5 + $0x1c] sm:$0xf]
  %v531 = vld [vmem:[%s6] sm:$0x1]
  %v533 = vlaneseq
  %v534 = vshrl.u32 %v533, 7
  %v535 = vsub.s32 0, %v534
  %v536 = vrot.slane %v531, %v535
  %v546 = vunpack.c.l.b16 %v523
  %v547 = vunpack.c.l.b16 %v524
  %v548 = vunpack.c.l.b16 %v525
  %v549 = vunpack.c.l.b16 %v526
  %v550 = vunpack.c.l.b16 %v527
  %v551 = vunpack.c.l.b16 %v528
  %v552 = vunpack.c.l.b16 %v529
  %v553 = vunpack.c.l.b16 %v530
  %v554 = vpack.c.b16 %v547, %v546
  %v555 = vpack.c.b16 %v549, %v548
  %v556 = vpack.c.b16 %v551, %v550
  %v557 = vpack.c.b16 %v553, %v552
  %vm562 = vcmask 523264
  %v564 = vsel %vm562, %v515, 0
  %v567 = vsel %vm562, %v516, 0
  %v570 = vsel %vm562, %v517, 0
  %v573 = vsel %vm562, %v518, 0
  %v576 = vsel %vm562, %v519, 0
  %v579 = vsel %vm562, %v520, 0
  %v582 = vsel %vm562, %v521, 0
  %v585 = vsel %vm562, %v522, 0
  %587 = vmatprep.subr.bf16.mxu0 0
  %588 = vmatpush1.bf16.msra.mxu0 %v554
  %589 = vmatprep.subr.bf16.mxu0 0
  %590 = vmatpush1.bf16.msra.mxu0 %v555
  %591 = vmatprep.subr.bf16.mxu0 0
  %592 = vmatpush1.bf16.msra.mxu0 %v556
  %593 = vmatprep.subr.bf16.mxu0 0
  %594 = vmatpush1.bf16.msra.mxu0 %v557
  %595 = vmatprep.subr.bf16.mxu0 0
  %596 = vmatpush1.bf16.msra.mxu0 0
  %597 = vmatprep.subr.bf16.mxu0 0
  %598 = vmatpush1.bf16.msra.mxu0 0
  %599 = vmatprep.subr.bf16.mxu0 0
  %600 = vmatpush1.bf16.msra.mxu0 0
  %601 = vmatprep.subr.bf16.mxu0 0
  %602 = vmatpush1.bf16.msra.mxu0 0
  %603 = vmatprep.subr.bf16.mxu0 0
  %604 = vmatpush1.bf16.msra.mxu0 0
  %605 = vmatprep.subr.bf16.mxu0 0
  %606 = vmatpush1.bf16.msra.mxu0 0
  %607 = vmatprep.subr.bf16.mxu0 0
  %608 = vmatpush1.bf16.msra.mxu0 0
  %609 = vmatprep.subr.bf16.mxu0 0
  %610 = vmatpush1.bf16.msra.mxu0 0
  %611 = vmatprep.subr.bf16.mxu0 0
  %612 = vmatpush1.bf16.msra.mxu0 0
  %613 = vmatprep.subr.bf16.mxu0 0
  %614 = vmatpush1.bf16.msra.mxu0 0
  %615 = vmatprep.subr.bf16.mxu0 0
  %616 = vmatpush1.bf16.msra.mxu0 0
  %617 = vmatprep.subr.bf16.mxu0 0
  %618 = vmatpush1.bf16.msra.mxu0 0
  %619 = vmatprep.mubr.bf16.mxu0 0
  %620 = vmatmul.mubr.bf16.gmra.mrb[0].mxu0 %v564
  %v621 = vpop.f32.mrb[0].mxu0
  %v622 = vadd.f32 %v536, %v621
  %v623 = vpop.f32.mrb[0].mxu0
  %v624 = vpop.f32.mrb[0].mxu0
  %v625 = vadd.f32 %v536, %v624
  %v626 = vpop.f32.mrb[0].mxu0
  %627 = vmatprep.mubr.bf16.mxu0 0
  %628 = vmatmul.mubr.bf16.gmra.mrb[0].mxu0 %v567
  %v629 = vpop.f32.mrb[0].mxu0
  %v630 = vadd.f32 %v536, %v629
  %v631 = vpop.f32.mrb[0].mxu0
  %v632 = vpop.f32.mrb[0].mxu0
  %v633 = vadd.f32 %v536, %v632
  %v634 = vpop.f32.mrb[0].mxu0
  %635 = vmatprep.mubr.bf16.mxu0 0
  %636 = vmatmul.mubr.bf16.gmra.mrb[0].mxu0 %v570
  %v637 = vpop.f32.mrb[0].mxu0
  %v638 = vadd.f32 %v536, %v637
  %v639 = vpop.f32.mrb[0].mxu0
  %v640 = vpop.f32.mrb[0].mxu0
  %v641 = vadd.f32 %v536, %v640
  %v642 = vpop.f32.mrb[0].mxu0
  %643 = vmatprep.mubr.bf16.mxu0 0
  %644 = vmatmul.mubr.bf16.gmra.mrb[0].mxu0 %v573
  %v645 = vpop.f32.mrb[0].mxu0
  %v646 = vadd.f32 %v536, %v645
  %v647 = vpop.f32.mrb[0].mxu0
  %v648 = vpop.f32.mrb[0].mxu0
  %v649 = vadd.f32 %v536, %v648
  %v650 = vpop.f32.mrb[0].mxu0
  %651 = vmatprep.mubr.bf16.mxu0 0
  %652 = vmatmul.mubr.bf16.gmra.mrb[0].mxu0 %v576
  %v653 = vpop.f32.mrb[0].mxu0
  %v654 = vadd.f32 %v536, %v653
  %v655 = vpop.f32.mrb[0].mxu0
  %v656 = vpop.f32.mrb[0].mxu0
  %v657 = vadd.f32 %v536, %v656
  %v658 = vpop.f32.mrb[0].mxu0
  %659 = vmatprep.mubr.bf16.mxu0 0
  %660 = vmatmul.mubr.bf16.gmra.mrb[0].mxu0 %v579
  %v661 = vpop.f32.mrb[0].mxu0
  %v662 = vadd.f32 %v536, %v661
  %v663 = vpop.f32.mrb[0].mxu0
  %v664 = vpop.f32.mrb[0].mxu0
  %v665 = vadd.f32 %v536, %v664
  %v666 = vpop.f32.mrb[0].mxu0
  %667 = vmatprep.mubr.bf16.mxu0 0
  %668 = vmatmul.mubr.bf16.gmra.mrb[0].mxu0 %v582
  %v669 = vpop.f32.mrb[0].mxu0
  %v670 = vadd.f32 %v536, %v669
  %v671 = vpop.f32.mrb[0].mxu0
  %v672 = vpop.f32.mrb[0].mxu0
  %v673 = vadd.f32 %v536, %v672
  %v674 = vpop.f32.mrb[0].mxu0
  %675 = vmatprep.mubr.bf16.mxu0 0
  %676 = vmatmul.mubr.bf16.gmra.mrb[0].mxu0 %v585
  %v677 = vpop.f32.mrb[0].mxu0
  %v678 = vadd.f32 %v536, %v677
  %v679 = vpop.f32.mrb[0].mxu0
  %v680 = vpop.f32.mrb[0].mxu0
  %v681 = vadd.f32 %v536, %v680
  %v682 = vpop.f32.mrb[0].mxu0
  %683 = vdwg.mxu0
  %684 = vst [vmem:[%s7] sm:$0xff] %v622
  %685 = vst [vmem:[%s7 + $0x8] sm:$0xff] %v625
  %686 = vst [vmem:[%s7 + $0x10] sm:$0xff] %v630
  %687 = vst [vmem:[%s7 + $0x18] sm:$0xff] %v633
  %688 = vst [vmem:[%s7 + $0x20] sm:$0xff] %v638
  %689 = vst [vmem:[%s7 + $0x28] sm:$0xff] %v641
  %690 = vst [vmem:[%s7 + $0x30] sm:$0xff] %v646
  %691 = vst [vmem:[%s7 + $0x38] sm:$0xff] %v649
  %692 = vst [vmem:[%s7 + $0x40] sm:$0xff] %v654
  %693 = vst [vmem:[%s7 + $0x48] sm:$0xff] %v657
  %694 = vst [vmem:[%s7 + $0x50] sm:$0xff] %v662
  %695 = vst [vmem:[%s7 + $0x58] sm:$0xff] %v665
  %696 = vst [vmem:[%s7 + $0x60] sm:$0xff] %v670
  %697 = vst [vmem:[%s7 + $0x68] sm:$0xff] %v673
  %698 = vst [vmem:[%s7 + $0x70] sm:$0xff] %v678
  %699 = vst [vmem:[%s7 + $0x78] sm:$0xff] %v681
  // Predicated region
  $region30: #{mlp_forward.1} parent=0 // pred_check
    _
  $region31: #{mlp_forward.1} parent=0 // pred_check_branch
    %701 = sbr.rel (0) target = $region33
  $region32: #{mlp_forward.1} parent=0 // pred_region
    _
  $region33: #{mlp_forward.1} parent=0 // pred_fallthru
    _
  // Predicated region
  $region34: #{mlp_forward.1} parent=0 // pred_check
    _
  $region35: #{mlp_forward.1} parent=0 // pred_check_branch
    %703 = sbr.rel (0) target = $region37
  $region36: #{mlp_forward.1} parent=0 // pred_region
    _
  $region37: #{mlp_forward.1} parent=0 // pred_fallthru
    _

</llo_original>
